<compile_context>
chip_gen: v7x
topology: tpu7x:2x2x1
jax: 0.10.0
libtpu: 0.0.40
codegen_flags: <defaults>
</compile_context>

<pallas_src>
import functools

import jax
import jax.numpy as jnp
from jax.experimental import pallas as pl
from jax.experimental.pallas import tpu as pltpu  # noqa: F401  (TPU backend)


# ----------------------------------------------------------------------------
# Fused Pallas kernel — ONE grid step over the whole batch
# ----------------------------------------------------------------------------
def _fused_kernel(mfcc_ref, img_ref, cnn1_ref, big_ref, o_ref,
                  *, cm, hidden, chw):
    f32 = jnp.float32

    # ---- CNN branch: global-average-pool over the lane axis -> fc1 + ReLU.
    pooled = jnp.mean(mfcc_ref[...], axis=-1)                  # (B, Cm)
    w_c1 = cnn1_ref[0:cm, :]                                   # (Cm, hidden)
    b_c1 = cnn1_ref[cm:cm + 1, :]                              # (1, hidden)
    if cm == 1:
        # K=1 "matmul": pure VPU broadcast-multiply + add (keeps the MXU free).
        h = pooled * w_c1 + b_c1                               # (B, hidden)
    else:
        h = jnp.dot(pooled, w_c1, preferred_element_type=f32) + b_c1
    h = jnp.maximum(h, 0.0)

    # ---- Everything downstream (cnn_fc2, vit embed+head, concat + final fc)
    #      was folded at param-prep time into two matmuls + one bias.
    # TODO(synk): full transformer encoder (MHSA blocks) of a real ViT omitted;
    # stand-in uses linear patch-embed + mean token pooling + linear head.
    w_cnn2 = big_ref[0:hidden, :]                              # (hidden, nc)
    w_vit = big_ref[hidden:hidden + chw, :]                    # (CHW, nc)
    b_all = big_ref[hidden + chw:hidden + chw + 1, :]          # (1, nc)

    out = (jnp.dot(h, w_cnn2, preferred_element_type=f32)
           + jnp.dot(img_ref[...], w_vit, preferred_element_type=f32)
           + b_all)                                            # (B, nc)
    o_ref[...] = out


def combined_model_forward(kparams, mfcc, image):
    """Fused forward.  mfcc: (B, C_m, H, W) NCHW, image: (B, C, H, W) NCHW."""
    B, Cm, Hm, Wm = mfcc.shape
    Bi, C, H, W = image.shape
    assert B == Bi
    hidden = kparams["cnn1"].shape[1]
    chw = C * H * W
    nc = kparams["big"].shape[1]

    # Free, contiguous reshapes (layout plumbing only) to lane-dense slabs.
    mfcc_rows = mfcc.reshape(B, Cm, Hm * Wm)   # reduce over last (lane) axis
    img_rows = image.reshape(B, chw)           # one row-vector per sample

    kernel = functools.partial(_fused_kernel, cm=Cm, hidden=hidden, chw=chw)

    out = pl.pallas_call(
        kernel,
        out_shape=jax.ShapeDtypeStruct((B, nc), jnp.float32),
        grid=(1,),                               # single step, whole batch
        in_specs=[
            pl.BlockSpec((B, Cm, Hm * Wm), lambda i: (0, 0, 0)),
            pl.BlockSpec((B, chw), lambda i: (0, 0)),
            pl.BlockSpec(kparams["cnn1"].shape, lambda i: (0, 0)),
            pl.BlockSpec(kparams["big"].shape, lambda i: (0, 0)),
        ],
        out_specs=pl.BlockSpec((B, nc), lambda i: (0, 0)),
    )(mfcc_rows, img_rows, kparams["cnn1"], kparams["big"])

    return out


# ----------------------------------------------------------------------------
# Parameter init (torch conventions) + one-time kernel-layout preparation
# ----------------------------------------------------------------------------
def init_params(key, num_classes=4, mfcc_ch=1, img_ch=3, img_hw=16,
                patch=8, hidden=32, embed=32):
    ks = jax.random.split(key, 8)
    s = 0.02
    n_patches = (img_hw // patch) ** 2
    patch_dim = img_ch * patch * patch
    params = {
        # cnn_model (stand-in), torch nn.Linear convention: W is (out, in)
        "cnn_fc1_w": s * jax.random.normal(ks[0], (hidden, mfcc_ch), jnp.float32),
        "cnn_fc1_b": jnp.zeros((hidden,), jnp.float32),
        "cnn_fc2_w": s * jax.random.normal(ks[1], (num_classes, hidden), jnp.float32),
        "cnn_fc2_b": jnp.zeros((num_classes,), jnp.float32),
        # vit_model (stand-in)
        "vit_embed_w": s * jax.random.normal(ks[2], (embed, patch_dim), jnp.float32),
        "vit_embed_b": jnp.zeros((embed,), jnp.float32),
        "vit_head_w": s * jax.random.normal(ks[3], (num_classes, embed), jnp.float32),
        "vit_head_b": jnp.zeros((num_classes,), jnp.float32),
        # CombinedModel.fc : Linear(num_classes*2, num_classes)
        "fc_w": s * jax.random.normal(ks[4], (num_classes, num_classes * 2), jnp.float32),
        "fc_b": jnp.zeros((num_classes,), jnp.float32),
    }
    meta = dict(num_classes=num_classes, patch=patch, n_patches=n_patches,
                patch_dim=patch_dim, hidden=hidden, embed=embed)
    return params, meta


def prepare_params(params, meta, image_shape):
    """One-time prep: fold all linear chains into two weight slabs.

    Slab `cnn1` (Cm+1, hidden):  [cnn_fc1_w^T ; cnn_fc1_b]
    Slab `big`  (hidden+CHW+1, nc): [cnn_fc2^T @ fc_cnn ;
                                     fold(patchify∘embed∘mean) @ head^T @ fc_vit ;
                                     folded bias]
    NOTE: shape-dependent on image_shape / patch; re-run if those change.
    """
    _, C, H, W = image_shape
    p = meta["patch"]
    n_patches = meta["n_patches"]
    nc = meta["num_classes"]
    hidden = meta["hidden"]

    # Fold patchify + patch-embed + mean-over-patches into one (C*H*W, embed)
    # matmul: flat pixel (c,h,w) maps to patch-feature column
    # c*p*p + (h%p)*p + (w%p), scaled by 1/n_patches.
    c_idx = jnp.arange(C).reshape(C, 1, 1)
    h_idx = jnp.arange(H).reshape(1, H, 1)
    w_idx = jnp.arange(W).reshape(1, 1, W)
    col = (c_idx * p * p + (h_idx % p) * p + (w_idx % p)).reshape(-1)   # (C*H*W,)
    w_ve = jnp.take(params["vit_embed_w"].T, col, axis=0) / float(n_patches)

    # Split the final fc weight into its cnn / vit halves (torch cat order).
    w_f1 = params["fc_w"][:, :nc].T           # (nc, nc)  cnn half
    w_f2 = params["fc_w"][:, nc:].T           # (nc, nc)  vit half

    # Fold the remaining linear chains.
    w_vh_f2 = params["vit_head_w"].T @ w_f2   # (embed, nc)
    w_vit = w_ve @ w_vh_f2                    # (C*H*W, nc)
    w_cnn2 = params["cnn_fc2_w"].T @ w_f1     # (hidden, nc)
    b_all = (params["cnn_fc2_b"] @ w_f1
             + params["vit_embed_b"] @ w_vh_f2
             + params["vit_head_b"] @ w_f2
             + params["fc_b"]).reshape(1, nc)

    cnn1 = jnp.concatenate(
        [params["cnn_fc1_w"].T, params["cnn_fc1_b"].reshape(1, hidden)], axis=0)
    # Row offsets 0 / hidden / hidden+CHW are multiples of 8 at these shapes,
    # so the in-kernel static slices stay sublane-aligned.
    big = jnp.concatenate([w_cnn2, w_vit, b_all], axis=0)

    return {"cnn1": cnn1, "big": big}


# ----------------------------------------------------------------------------
# Pure-JAX reference (unfolded, torch-convention weights) for verification
# ----------------------------------------------------------------------------
def reference_forward(params, meta, mfcc, image):
    pooled = jnp.mean(mfcc, axis=(2, 3))
    h = jnp.maximum(pooled @ params["cnn_fc1_w"].T + params["cnn_fc1_b"], 0.0)
    cnn_f = h @ params["cnn_fc2_w"].T + params["cnn_fc2_b"]

    B, C, H, W = image.shape
    p = meta["patch"]
    x = image.reshape(B, C, H // p, p, W // p, p)
    x = jnp.transpose(x, (0, 2, 4, 1, 3, 5)).reshape(B, meta["n_patches"],
                                                     meta["patch_dim"])
    tok = x @ params["vit_embed_w"].T + params["vit_embed_b"]
    vit_f = jnp.mean(tok, axis=1) @ params["vit_head_w"].T + params["vit_head_b"]

    combined = jnp.concatenate([cnn_f, vit_f], axis=1)
    return combined @ params["fc_w"].T + params["fc_b"]


if __name__ == "__main__":
    key = jax.random.PRNGKey(0)
    k_param, k_mfcc, k_img = jax.random.split(key, 3)

    num_classes = 4
    mfcc = jax.random.normal(k_mfcc, (2, 1, 16, 16), jnp.float32)   # (B, C, n_mfcc, T)
    image = jax.random.normal(k_img, (2, 3, 16, 16), jnp.float32)   # (B, C, H, W)

    params, meta = init_params(k_param, num_classes=num_classes,
                               mfcc_ch=1, img_ch=3, img_hw=16,
                               patch=8, hidden=32, embed=32)
    kparams = prepare_params(params, meta, image.shape)   # one-time prep

    out = combined_model_forward(kparams, mfcc, image)
    out = jax.block_until_ready(out)

    ref = reference_forward(params, meta, mfcc, image)
    assert out.shape == (2, num_classes)
    assert jnp.allclose(out, ref, atol=1e-4, rtol=1e-4)

    print("KERNEL_OK")
</pallas_src>

<mosaic_0001>
module attributes {stable_mosaic.version = 11 : i64} {
  func.func @_fused_kernel(%arg0: i32, %arg1: memref<2x1x256xf32, #tpu.memory_space<vmem>>, %arg2: memref<2x768xf32, #tpu.memory_space<vmem>>, %arg3: memref<2x32xf32, #tpu.memory_space<vmem>>, %arg4: memref<801x4xf32, #tpu.memory_space<vmem>>, %arg5: memref<2x4xf32, #tpu.memory_space<vmem>>) attributes {dimension_semantics = [#tpu.dimension_semantics<arbitrary>], iteration_bounds = array<i64: 1>, scalar_prefetch = 0 : i64, scratch_operands = 0 : i64, tpu.core_type = #tpu.core_type<tc>, window_params = [{pipeline_mode = #tpu.pipeline_mode<synchronous>, transform_indices = @transform_0, window_bounds = array<i64: 2, 1, 256>}, {pipeline_mode = #tpu.pipeline_mode<synchronous>, transform_indices = @transform_1, window_bounds = array<i64: 2, 768>}, {pipeline_mode = #tpu.pipeline_mode<synchronous>, transform_indices = @transform_2, window_bounds = array<i64: 2, 32>}, {pipeline_mode = #tpu.pipeline_mode<synchronous>, transform_indices = @transform_3, window_bounds = array<i64: 801, 4>}, {pipeline_mode = #tpu.pipeline_mode<synchronous>, transform_indices = @transform_4, window_bounds = array<i64: 2, 4>}]} {
    %c0 = arith.constant 0 : index
    %c0_0 = arith.constant 0 : index
    %c0_1 = arith.constant 0 : index
    %0 = vector.load %arg1[%c0, %c0_0, %c0_1] : memref<2x1x256xf32, #tpu.memory_space<vmem>>, vector<2x1x256xf32>
    %cst = arith.constant dense<0.000000e+00> : vector<2x1xf32>
    %1 = vector.multi_reduction <add>, %0, %cst [2] : vector<2x1x256xf32> to vector<2x1xf32>
    %cst_2 = arith.constant 2.560000e+02 : f32
    %2 = vector.broadcast %cst_2 : f32 to vector<2x1xf32>
    %3 = arith.divf %1, %2 : vector<2x1xf32>
    %c0_3 = arith.constant 0 : index
    %c0_4 = arith.constant 0 : index
    %4 = vector.load %arg3[%c0_3, %c0_4] : memref<2x32xf32, #tpu.memory_space<vmem>>, vector<1x32xf32>
    %c1 = arith.constant 1 : index
    %c0_5 = arith.constant 0 : index
    %5 = vector.load %arg3[%c1, %c0_5] : memref<2x32xf32, #tpu.memory_space<vmem>>, vector<1x32xf32>
    %6 = vector.broadcast %3 : vector<2x1xf32> to vector<2x32xf32>
    %7 = vector.broadcast %4 : vector<1x32xf32> to vector<2x32xf32>
    %8 = arith.mulf %6, %7 : vector<2x32xf32>
    %9 = vector.broadcast %5 : vector<1x32xf32> to vector<2x32xf32>
    %10 = arith.addf %8, %9 : vector<2x32xf32>
    %cst_6 = arith.constant 0.000000e+00 : f32
    %11 = vector.broadcast %cst_6 : f32 to vector<2x32xf32>
    %12 = arith.maximumf %10, %11 : vector<2x32xf32>
    %c0_7 = arith.constant 0 : index
    %c0_8 = arith.constant 0 : index
    %13 = vector.load %arg4[%c0_7, %c0_8] : memref<801x4xf32, #tpu.memory_space<vmem>>, vector<32x4xf32>
    %c32 = arith.constant 32 : index
    %c0_9 = arith.constant 0 : index
    %14 = vector.load %arg4[%c32, %c0_9] : memref<801x4xf32, #tpu.memory_space<vmem>>, vector<768x4xf32>
    %c800 = arith.constant 800 : index
    %c0_10 = arith.constant 0 : index
    %15 = vector.load %arg4[%c800, %c0_10] : memref<801x4xf32, #tpu.memory_space<vmem>>, vector<1x4xf32>
    %cst_11 = arith.constant dense<0.000000e+00> : vector<2x4xf32>
    %16 = tpu.matmul %12, %13, %cst_11 {dimension_numbers = #tpu.dot_dimension_numbers<[1], [0], [0], [1], [0, 0, 1, 1], [], []>} : vector<2x32xf32>, vector<32x4xf32>, vector<2x4xf32> -> vector<2x4xf32>
    %c0_12 = arith.constant 0 : index
    %c0_13 = arith.constant 0 : index
    %17 = vector.load %arg2[%c0_12, %c0_13] : memref<2x768xf32, #tpu.memory_space<vmem>>, vector<2x768xf32>
    %cst_14 = arith.constant dense<0.000000e+00> : vector<2x4xf32>
    %18 = tpu.matmul %17, %14, %cst_14 {dimension_numbers = #tpu.dot_dimension_numbers<[1], [0], [0], [1], [0, 0, 1, 1], [], []>} : vector<2x768xf32>, vector<768x4xf32>, vector<2x4xf32> -> vector<2x4xf32>
    %19 = arith.addf %16, %18 : vector<2x4xf32>
    %20 = vector.broadcast %15 : vector<1x4xf32> to vector<2x4xf32>
    %21 = arith.addf %19, %20 : vector<2x4xf32>
    %c0_15 = arith.constant 0 : index
    %c0_16 = arith.constant 0 : index
    %22 = vector.load %arg5[%c0_15, %c0_16] : memref<2x4xf32, #tpu.memory_space<vmem>>, vector<2x4xf32>
    tpu.vector_store %arg5[%c0_15, %c0_16], %21 {strides = array<i32>} : memref<2x4xf32, #tpu.memory_space<vmem>>, vector<2x4xf32>,
    return
  }
  func.func @transform_0(%arg0: i32) -> (i32, i32, i32) {
    %c0_i32 = arith.constant 0 : i32
    %c0_i32_0 = arith.constant 0 : i32
    %c0_i32_1 = arith.constant 0 : i32
    %c0_i32_2 = arith.constant 0 : i32
    return %c0_i32, %c0_i32_0, %c0_i32_1 : i32, i32, i32
  }
  func.func @transform_1(%arg0: i32) -> (i32, i32) {
    %c0_i32 = arith.constant 0 : i32
    %c0_i32_0 = arith.constant 0 : i32
    %c0_i32_1 = arith.constant 0 : i32
    return %c0_i32, %c0_i32_0 : i32, i32
  }
  func.func @transform_2(%arg0: i32) -> (i32, i32) {
    %c0_i32 = arith.constant 0 : i32
    %c0_i32_0 = arith.constant 0 : i32
    %c0_i32_1 = arith.constant 0 : i32
    return %c0_i32, %c0_i32_0 : i32, i32
  }
  func.func @transform_3(%arg0: i32) -> (i32, i32) {
    %c0_i32 = arith.constant 0 : i32
    %c0_i32_0 = arith.constant 0 : i32
    %c0_i32_1 = arith.constant 0 : i32
    return %c0_i32, %c0_i32_0 : i32, i32
  }
  func.func @transform_4(%arg0: i32) -> (i32, i32) {
    %c0_i32 = arith.constant 0 : i32
    %c0_i32_0 = arith.constant 0 : i32
    %c0_i32_1 = arith.constant 0 : i32
    return %c0_i32, %c0_i32_0 : i32, i32
  }
}

</mosaic_0001>

<llo_original>
// kernel: tpu_custom_call.1
$region0: #{tpu_custom_call.1}
  #allocation0 [shape = 'u32[]', space=smem, size = 0x4, offset = 0x4, fixed_abs, tag = 'smem constant byte address 0x4 - core index']
  #allocation1 [shape = 'u32[144,128]{1,0:T(1,128)}', space=vmem, size = 0x12000, scoped, tag = 'internal scratch']
  %s0 = inlined_call_operand.vmem [shape: f32[2,1,256], index: 0, kind: input, shape index: {}]
  %s1 = inlined_call_operand.vmem [shape: f32[2,768], index: 1, kind: input, shape index: {}]
  %s2 = inlined_call_operand.vmem [shape: f32[2,32], index: 2, kind: input, shape index: {}]
  %s3 = inlined_call_operand.vmem [shape: f32[801,4], index: 3, kind: input, shape index: {}]
  %s4 = inlined_call_operand.hbm [shape: f32[2,4], index: 4, kind: output, shape index: {}]
  %s5 = sld [smem:[#allocation0]]
  $region26: #{tpu_custom_call.1} parent=0
    _
  %s7 = ssub.s32 1, %s5
  %s8 = scalar_select 0, %s7, %s5
  $region1: #{tpu_custom_call.1} parent=0
    #allocation2 [shape = 'u8[1024]{0}', space=vmem, size = 0x400, scoped, tag = 'output window, operand 0, single buffered']
    #allocation3 [shape = 's32[1]{0}', space=sflag, size = 0x4, scoped, tag = 'scoped memory for tpu_custom_call.1']
    %9 = vsyncpa [#allocation3], 0
    // Predicated region
    $region2: #{tpu_custom_call.1} parent=1 // pred_check
      _
    $region3: #{tpu_custom_call.1} parent=1 // pred_check_branch
      %11 = sbr.rel (0) target = $region5
    $region4: #{tpu_custom_call.1} parent=1 // pred_region
      _
    $region5: #{tpu_custom_call.1} parent=1 // pred_fallthru
      _
    // Predicated region
    $region6: #{tpu_custom_call.1} parent=1 // pred_check
      _
    $region7: #{tpu_custom_call.1} parent=1 // pred_check_branch
      %13 = sbr.rel (0) target = $region9
    $region8: #{tpu_custom_call.1} parent=1 // pred_region
      _
    $region9: #{tpu_custom_call.1} parent=1 // pred_fallthru
      _
    // Predicated region
    $region10: #{tpu_custom_call.1} parent=1 // pred_check
      _
    $region11: #{tpu_custom_call.1} parent=1 // pred_check_branch
      %15 = sbr.rel (0) target = $region13
    $region12: #{tpu_custom_call.1} parent=1 // pred_region
      _
    $region13: #{tpu_custom_call.1} parent=1 // pred_fallthru
      _
    // Predicated region
    $region14: #{tpu_custom_call.1} parent=1 // pred_check
      _
    $region15: #{tpu_custom_call.1} parent=1 // pred_check_branch
      %17 = sbr.rel (0) target = $region17
    $region16: #{tpu_custom_call.1} parent=1 // pred_region
      _
    $region17: #{tpu_custom_call.1} parent=1 // pred_fallthru
      _
    %v18 = vld [vmem:[%s0] sm:$0x3]
    %v19 = vld [vmem:[%s0 + $0x2] sm:$0x3]
    %v22 = vlaneseq
    %v23 = vshrl.u32 %v22, 7
    %v24 = vsub.s32 0, %v23
    %v25 = vrot.slane %v18, %v24
    %v26 = vlaneseq
    %v27 = vshrl.u32 %v26, 7
    %v28 = vsub.s32 1, %v27
    %v29 = vrot.slane %v18, %v28
    %v30 = vlaneseq
    %v31 = vshrl.u32 %v30, 7
    %v32 = vsub.s32 0, %v31
    %v33 = vrot.slane %v19, %v32
    %v34 = vlaneseq
    %v35 = vshrl.u32 %v34, 7
    %v36 = vsub.s32 1, %v35
    %v37 = vrot.slane %v19, %v36
    %vm42 = vcmask 1040384
    %v43 = vsel %vm42, %v25, 0.0
    %v44 = vsel %vm42, %v29, 0.0
    %v45 = vadd.f32 %v43, %v44
    %46 = vadd.xlane.f32.xlu0 %v45
    %v47 = vpop.xlane.xlu0 %46
    %v48 = vsel %vm42, %v33, 0.0
    %v49 = vsel %vm42, %v37, 0.0
    %v50 = vadd.f32 %v48, %v49
    %51 = vadd.xlane.f32.xlu0 %v50
    %v52 = vpop.xlane.xlu0 %51
    %v53 = vrcp.pop 256.0
    %v54 = vmul.f32 %v47, %v53
    %v55 = vmul.f32 %v52, %v53
    %v56 = vld [vmem:[%s2] sm:$0x1]
    %v57 = vld [vmem:[%s2 + $0x1] sm:$0x1]
    %v58 = vlaneseq
    %v59 = vshrl.u32 %v58, 7
    %v60 = vsub.s32 0, %v59
    %v61 = vrot.slane %v54, %v60
    %v62 = vlaneseq
    %v63 = vshrl.u32 %v62, 7
    %v64 = vsub.s32 0, %v63
    %v65 = vrot.slane %v55, %v64
    %v66 = vlaneseq
    %v67 = vshrl.u32 %v66, 7
    %v68 = vsub.s32 0, %v67
    %v69 = vrot.slane %v56, %v68
    %72 = vbcast.lane.b32.xlu0 %v69, 256
    %v73 = vpop.permute.xlu0 %72
    %s75 = sor.u32 256, 8
    %76 = vbcast.lane.b32.xlu0 %v69, %s75
    %v77 = vpop.permute.xlu0 %76
    %s79 = sor.u32 256, 16
    %80 = vbcast.lane.b32.xlu0 %v69, %s79
    %v81 = vpop.permute.xlu0 %80
    %s83 = sor.u32 256, 24
    %84 = vbcast.lane.b32.xlu0 %v69, %s83
    %v85 = vpop.permute.xlu0 %84
    %v90 = vmul.f32 %v61, %v73
    %v91 = vmul.f32 %v61, %v77
    %v92 = vmul.f32 %v61, %v81
    %v93 = vmul.f32 %v61, %v85
    %v94 = vmul.f32 %v65, %v73
    %v95 = vmul.f32 %v65, %v77
    %v96 = vmul.f32 %v65, %v81
    %v97 = vmul.f32 %v65, %v85
    %v98 = vlaneseq
    %v99 = vshrl.u32 %v98, 7
    %v100 = vsub.s32 0, %v99
    %v101 = vrot.slane %v57, %v100
    %104 = vbcast.lane.b32.xlu0 %v101, 256
    %v105 = vpop.permute.xlu0 %104
    %s107 = sor.u32 256, 8
    %108 = vbcast.lane.b32.xlu0 %v101, %s107
    %v109 = vpop.permute.xlu0 %108
    %s111 = sor.u32 256, 16
    %112 = vbcast.lane.b32.xlu0 %v101, %s111
    %v113 = vpop.permute.xlu0 %112
    %s115 = sor.u32 256, 24
    %116 = vbcast.lane.b32.xlu0 %v101, %s115
    %v117 = vpop.permute.xlu0 %116
    %v122 = vadd.f32 %v90, %v105
    %v123 = vadd.f32 %v91, %v109
    %v124 = vadd.f32 %v92, %v113
    %v125 = vadd.f32 %v93, %v117
    %v126 = vadd.f32 %v94, %v105
    %v127 = vadd.f32 %v95, %v109
    %v128 = vadd.f32 %v96, %v113
    %v129 = vadd.f32 %v97, %v117
    %v130 = vmax.f32 %v122, 0.0
    %v131 = vmax.f32 %v123, 0.0
    %v132 = vmax.f32 %v124, 0.0
    %v133 = vmax.f32 %v125, 0.0
    %v134 = vmax.f32 %v126, 0.0
    %v135 = vmax.f32 %v127, 0.0
    %v136 = vmax.f32 %v128, 0.0
    %v137 = vmax.f32 %v129, 0.0
    %v138 = vld [vmem:[%s3] sm:$0xff]
    %v139 = vld [vmem:[%s3 + $0x8] sm:$0xff]
    %v140 = vld [vmem:[%s3 + $0x10] sm:$0xff]
    %v141 = vld [vmem:[%s3 + $0x18] sm:$0xff]
    %v142 = vld [vmem:[%s3 + $0x20] sm:$0xff]
    %v143 = vld [vmem:[%s3 + $0x28] sm:$0xff]
    %v144 = vld [vmem:[%s3 + $0x30] sm:$0xff]
    %v145 = vld [vmem:[%s3 + $0x38] sm:$0xff]
    %v146 = vld [vmem:[%s3 + $0x40] sm:$0xff]
    %v147 = vld [vmem:[%s3 + $0x48] sm:$0xff]
    %v148 = vld [vmem:[%s3 + $0x50] sm:$0xff]
    %v149 = vld [vmem:[%s3 + $0x58] sm:$0xff]
    %v150 = vld [vmem:[%s3 + $0x60] sm:$0xff]
    %v151 = vld [vmem:[%s3 + $0x68] sm:$0xff]
    %v152 = vld [vmem:[%s3 + $0x70] sm:$0xff]
    %v153 = vld [vmem:[%s3 + $0x78] sm:$0xff]
    %v154 = vld [vmem:[%s3 + $0x80] sm:$0xff]
    %v155 = vld [vmem:[%s3 + $0x88] sm:$0xff]
    %v156 = vld [vmem:[%s3 + $0x90] sm:$0xff]
    %v157 = vld [vmem:[%s3 + $0x98] sm:$0xff]
    %v158 = vld [vmem:[%s3 + $0xa0] sm:$0xff]
    %v159 = vld [vmem:[%s3 + $0xa8] sm:$0xff]
    %v160 = vld [vmem:[%s3 + $0xb0] sm:$0xff]
    %v161 = vld [vmem:[%s3 + $0xb8] sm:$0xff]
    %v162 = vld [vmem:[%s3 + $0xc0] sm:$0xff]
    %v163 = vld [vmem:[%s3 + $0xc8] sm:$0xff]
    %v164 = vld [vmem:[%s3 + $0xd0] sm:$0xff]
    %v165 = vld [vmem:[%s3 + $0xd8] sm:$0xff]
    %v166 = vld [vmem:[%s3 + $0xe0] sm:$0xff]
    %v167 = vld [vmem:[%s3 + $0xe8] sm:$0xff]
    %v168 = vld [vmem:[%s3 + $0xf0] sm:$0xff]
    %v169 = vld [vmem:[%s3 + $0xf8] sm:$0xff]
    %v170 = vld [vmem:[%s3 + $0x100] sm:$0xff]
    %v171 = vld [vmem:[%s3 + $0x108] sm:$0xff]
    %v172 = vld [vmem:[%s3 + $0x110] sm:$0xff]
    %v173 = vld [vmem:[%s3 + $0x118] sm:$0xff]
    %v174 = vld [vmem:[%s3 + $0x120] sm:$0xff]
    %v175 = vld [vmem:[%s3 + $0x128] sm:$0xff]
    %v176 = vld [vmem:[%s3 + $0x130] sm:$0xff]
    %v177 = vld [vmem:[%s3 + $0x138] sm:$0xff]
    %v178 = vld [vmem:[%s3 + $0x140] sm:$0xff]
    %v179 = vld [vmem:[%s3 + $0x148] sm:$0xff]
    %v180 = vld [vmem:[%s3 + $0x150] sm:$0xff]
    %v181 = vld [vmem:[%s3 + $0x158] sm:$0xff]
    %v182 = vld [vmem:[%s3 + $0x160] sm:$0xff]
    %v183 = vld [vmem:[%s3 + $0x168] sm:$0xff]
    %v184 = vld [vmem:[%s3 + $0x170] sm:$0xff]
    %v185 = vld [vmem:[%s3 + $0x178] sm:$0xff]
    %v186 = vld [vmem:[%s3 + $0x180] sm:$0xff]
    %v187 = vld [vmem:[%s3 + $0x188] sm:$0xff]
    %v188 = vld [vmem:[%s3 + $0x190] sm:$0xff]
    %v189 = vld [vmem:[%s3 + $0x198] sm:$0xff]
    %v190 = vld [vmem:[%s3 + $0x1a0] sm:$0xff]
    %v191 = vld [vmem:[%s3 + $0x1a8] sm:$0xff]
    %v192 = vld [vmem:[%s3 + $0x1b0] sm:$0xff]
    %v193 = vld [vmem:[%s3 + $0x1b8] sm:$0xff]
    %v194 = vld [vmem:[%s3 + $0x1c0] sm:$0xff]
    %v195 = vld [vmem:[%s3 + $0x1c8] sm:$0xff]
    %v196 = vld [vmem:[%s3 + $0x1d0] sm:$0xff]
    %v197 = vld [vmem:[%s3 + $0x1d8] sm:$0xff]
    %v198 = vld [vmem:[%s3 + $0x1e0] sm:$0xff]
    %v199 = vld [vmem:[%s3 + $0x1e8] sm:$0xff]
    %v200 = vld [vmem:[%s3 + $0x1f0] sm:$0xff]
    %v201 = vld [vmem:[%s3 + $0x1f8] sm:$0xff]
    %v202 = vld [vmem:[%s3 + $0x200] sm:$0xff]
    %v203 = vld [vmem:[%s3 + $0x208] sm:$0xff]
    %v204 = vld [vmem:[%s3 + $0x210] sm:$0xff]
    %v205 = vld [vmem:[%s3 + $0x218] sm:$0xff]
    %v206 = vld [vmem:[%s3 + $0x220] sm:$0xff]
    %v207 = vld [vmem:[%s3 + $0x228] sm:$0xff]
    %v208 = vld [vmem:[%s3 + $0x230] sm:$0xff]
    %v209 = vld [vmem:[%s3 + $0x238] sm:$0xff]
    %v210 = vld [vmem:[%s3 + $0x240] sm:$0xff]
    %v211 = vld [vmem:[%s3 + $0x248] sm:$0xff]
    %v212 = vld [vmem:[%s3 + $0x250] sm:$0xff]
    %v213 = vld [vmem:[%s3 + $0x258] sm:$0xff]
    %v214 = vld [vmem:[%s3 + $0x260] sm:$0xff]
    %v215 = vld [vmem:[%s3 + $0x268] sm:$0xff]
    %v216 = vld [vmem:[%s3 + $0x270] sm:$0xff]
    %v217 = vld [vmem:[%s3 + $0x278] sm:$0xff]
    %v218 = vld [vmem:[%s3 + $0x280] sm:$0xff]
    %v219 = vld [vmem:[%s3 + $0x288] sm:$0xff]
    %v220 = vld [vmem:[%s3 + $0x290] sm:$0xff]
    %v221 = vld [vmem:[%s3 + $0x298] sm:$0xff]
    %v222 = vld [vmem:[%s3 + $0x2a0] sm:$0xff]
    %v223 = vld [vmem:[%s3 + $0x2a8] sm:$0xff]
    %v224 = vld [vmem:[%s3 + $0x2b0] sm:$0xff]
    %v225 = vld [vmem:[%s3 + $0x2b8] sm:$0xff]
    %v226 = vld [vmem:[%s3 + $0x2c0] sm:$0xff]
    %v227 = vld [vmem:[%s3 + $0x2c8] sm:$0xff]
    %v228 = vld [vmem:[%s3 + $0x2d0] sm:$0xff]
    %v229 = vld [vmem:[%s3 + $0x2d8] sm:$0xff]
    %v230 = vld [vmem:[%s3 + $0x2e0] sm:$0xff]
    %v231 = vld [vmem:[%s3 + $0x2e8] sm:$0xff]
    %v232 = vld [vmem:[%s3 + $0x2f0] sm:$0xff]
    %v233 = vld [vmem:[%s3 + $0x2f8] sm:$0xff]
    %v234 = vld [vmem:[%s3 + $0x300] sm:$0xff]
    %v235 = vld [vmem:[%s3 + $0x308] sm:$0xff]
    %v236 = vld [vmem:[%s3 + $0x310] sm:$0xff]
    %v237 = vld [vmem:[%s3 + $0x318] sm:$0xff]
    %v238 = vld [vmem:[%s3 + $0x320] sm:$0x1]
    %v239 = vld [vmem:[%s1] sm:$0xff]
    %v240 = vld [vmem:[%s1 + $0x8] sm:$0xf]
    %v243 = vcombine.high %v239, %v239
    %v245 = vunpack.c.l.s4 1983009808
    %v246 = vunpack.c.0.s8 %v245
    %v247 = vlaneseq
    %v248 = vshrl.u32 %v247, 7
    %v249 = vsub.s32 %v246, %v248
    %v250 = vrot.slane %v239, %v249
    %v252 = vunpack.c.l.s4 1983009808
    %v253 = vunpack.c.0.s8 %v252
    %v254 = vlaneseq
    %v255 = vshrl.u32 %v254, 7
    %v256 = vsub.s32 %v253, %v255
    %v257 = vrot.slane %v243, %v256
    %v258 = vcombine.high %v250, %v250
    %v259 = vcombine.high %v257, %v257
    %v261 = vunpack.c.l.s4 1983009808
    %v262 = vunpack.c.0.s8 %v261
    %v263 = vlaneseq
    %v264 = vshrl.u32 %v263, 7
    %v265 = vsub.s32 %v262, %v264
    %v266 = vrot.slane %v240, %v265
    %v267 = vcombine.high %v266, %v266
    %274 = vmatprep.subr.mxu0 0.0
    %275 = vmatpush1.msra.mxu0 %v142
    %276 = vmatprep.subr.mxu0 0.0
    %277 = vmatpush1.msra.mxu0 %v143
    %278 = vmatprep.subr.mxu0 0.0
    %279 = vmatpush1.msra.mxu0 %v144
    %280 = vmatprep.subr.mxu0 0.0
    %281 = vmatpush1.msra.mxu0 %v145
    %282 = vmatprep.subr.mxu0 0.0
    %283 = vmatpush1.msra.mxu0 %v146
    %284 = vmatprep.subr.mxu0 0.0
    %285 = vmatpush1.msra.mxu0 %v147
    %286 = vmatprep.subr.mxu0 0.0
    %287 = vmatpush1.msra.mxu0 %v148
    %288 = vmatprep.subr.mxu0 0.0
    %289 = vmatpush1.msra.mxu0 %v149
    %290 = vmatprep.subr.mxu0 0.0
    %291 = vmatpush1.msra.mxu0 %v150
    %292 = vmatprep.subr.mxu0 0.0
    %293 = vmatpush1.msra.mxu0 %v151
    %294 = vmatprep.subr.mxu0 0.0
    %295 = vmatpush1.msra.mxu0 %v152
    %296 = vmatprep.subr.mxu0 0.0
    %297 = vmatpush1.msra.mxu0 %v153
    %298 = vmatprep.subr.mxu0 0.0
    %299 = vmatpush1.msra.mxu0 %v154
    %300 = vmatprep.subr.mxu0 0.0
    %301 = vmatpush1.msra.mxu0 %v155
    %302 = vmatprep.subr.mxu0 0.0
    %303 = vmatpush1.msra.mxu0 %v156
    %304 = vmatprep.subr.mxu0 0.0
    %305 = vmatpush1.msra.mxu0 %v157
    %306 = vmatprep.subr.mxu0 0.0
    %307 = vmatpush1.msra.mxu0 %v158
    %308 = vmatprep.subr.mxu0 0.0
    %309 = vmatpush1.msra.mxu0 %v159
    %310 = vmatprep.subr.mxu0 0.0
    %311 = vmatpush1.msra.mxu0 %v160
    %312 = vmatprep.subr.mxu0 0.0
    %313 = vmatpush1.msra.mxu0 %v161
    %314 = vmatprep.subr.mxu0 0.0
    %315 = vmatpush1.msra.mxu0 %v162
    %316 = vmatprep.subr.mxu0 0.0
    %317 = vmatpush1.msra.mxu0 %v163
    %318 = vmatprep.subr.mxu0 0.0
    %319 = vmatpush1.msra.mxu0 %v164
    %320 = vmatprep.subr.mxu0 0.0
    %321 = vmatpush1.msra.mxu0 %v165
    %322 = vmatprep.subr.mxu0 0.0
    %323 = vmatpush1.msra.mxu0 %v166
    %324 = vmatprep.subr.mxu0 0.0
    %325 = vmatpush1.msra.mxu0 %v167
    %326 = vmatprep.subr.mxu0 0.0
    %327 = vmatpush1.msra.mxu0 %v168
    %328 = vmatprep.subr.mxu0 0.0
    %329 = vmatpush1.msra.mxu0 %v169
    %330 = vmatprep.subr.mxu0 0.0
    %331 = vmatpush1.msra.mxu0 %v170
    %332 = vmatprep.subr.mxu0 0.0
    %333 = vmatpush1.msra.mxu0 %v171
    %334 = vmatprep.subr.mxu0 0.0
    %335 = vmatpush1.msra.mxu0 %v172
    %336 = vmatprep.subr.mxu0 0.0
    %337 = vmatpush1.msra.mxu0 %v173
    %338 = vmatprep.mubr.f32.mxu0 %v258
    %339 = vmatmul.mubr.f32.gmra.mrb[0].mxu0 %v250
    %v340 = vpop.f32.mrb[0].mxu0
    %v341 = vadd.f32 0.0, %v340
    %v342 = vpop.f32.mrb[0].mxu0
    %343 = vdwg.mxu0
    %344 = vmatprep.subr.mxu0 0.0
    %345 = vmatpush1.msra.mxu0 %v174
    %346 = vmatprep.subr.mxu0 0.0
    %347 = vmatpush1.msra.mxu0 %v175
    %348 = vmatprep.subr.mxu0 0.0
    %349 = vmatpush1.msra.mxu0 %v176
    %350 = vmatprep.subr.mxu0 0.0
    %351 = vmatpush1.msra.mxu0 %v177
    %352 = vmatprep.subr.mxu0 0.0
    %353 = vmatpush1.msra.mxu0 %v178
    %354 = vmatprep.subr.mxu0 0.0
    %355 = vmatpush1.msra.mxu0 %v179
    %356 = vmatprep.subr.mxu0 0.0
    %357 = vmatpush1.msra.mxu0 %v180
    %358 = vmatprep.subr.mxu0 0.0
    %359 = vmatpush1.msra.mxu0 %v181
    %360 = vmatprep.subr.mxu0 0.0
    %361 = vmatpush1.msra.mxu0 %v182
    %362 = vmatprep.subr.mxu0 0.0
    %363 = vmatpush1.msra.mxu0 %v183
    %364 = vmatprep.subr.mxu0 0.0
    %365 = vmatpush1.msra.mxu0 %v184
    %366 = vmatprep.subr.mxu0 0.0
    %367 = vmatpush1.msra.mxu0 %v185
    %368 = vmatprep.subr.mxu0 0.0
    %369 = vmatpush1.msra.mxu0 %v186
    %370 = vmatprep.subr.mxu0 0.0
    %371 = vmatpush1.msra.mxu0 %v187
    %372 = vmatprep.subr.mxu0 0.0
    %373 = vmatpush1.msra.mxu0 %v188
    %374 = vmatprep.subr.mxu0 0.0
    %375 = vmatpush1.msra.mxu0 %v189
    %376 = vmatprep.subr.mxu0 0.0
    %377 = vmatpush1.msra.mxu0 %v190
    %378 = vmatprep.subr.mxu0 0.0
    %379 = vmatpush1.msra.mxu0 %v191
    %380 = vmatprep.subr.mxu0 0.0
    %381 = vmatpush1.msra.mxu0 %v192
    %382 = vmatprep.subr.mxu0 0.0
    %383 = vmatpush1.msra.mxu0 %v193
    %384 = vmatprep.subr.mxu0 0.0
    %385 = vmatpush1.msra.mxu0 %v194
    %386 = vmatprep.subr.mxu0 0.0
    %387 = vmatpush1.msra.mxu0 %v195
    %388 = vmatprep.subr.mxu0 0.0
    %389 = vmatpush1.msra.mxu0 %v196
    %390 = vmatprep.subr.mxu0 0.0
    %391 = vmatpush1.msra.mxu0 %v197
    %392 = vmatprep.subr.mxu0 0.0
    %393 = vmatpush1.msra.mxu0 %v198
    %394 = vmatprep.subr.mxu0 0.0
    %395 = vmatpush1.msra.mxu0 %v199
    %396 = vmatprep.subr.mxu0 0.0
    %397 = vmatpush1.msra.mxu0 %v200
    %398 = vmatprep.subr.mxu0 0.0
    %399 = vmatpush1.msra.mxu0 %v201
    %400 = vmatprep.subr.mxu0 0.0
    %401 = vmatpush1.msra.mxu0 %v202
    %402 = vmatprep.subr.mxu0 0.0
    %403 = vmatpush1.msra.mxu0 %v203
    %404 = vmatprep.subr.mxu0 0.0
    %405 = vmatpush1.msra.mxu0 %v204
    %406 = vmatprep.subr.mxu0 0.0
    %407 = vmatpush1.msra.mxu0 %v205
    %408 = vmatprep.mubr.f32.mxu0 %v259
    %409 = vmatmul.mubr.f32.gmra.mrb[0].mxu0 %v257
    %v410 = vpop.f32.mrb[0].mxu0
    %v411 = vadd.f32 %v341, %v410
    %v412 = vpop.f32.mrb[0].mxu0
    %413 = vdwg.mxu0
    %414 = vmatprep.subr.mxu0 0.0
    %415 = vmatpush1.msra.mxu0 %v206
    %416 = vmatprep.subr.mxu0 0.0
    %417 = vmatpush1.msra.mxu0 %v207
    %418 = vmatprep.subr.mxu0 0.0
    %419 = vmatpush1.msra.mxu0 %v208
    %420 = vmatprep.subr.mxu0 0.0
    %421 = vmatpush1.msra.mxu0 %v209
    %422 = vmatprep.subr.mxu0 0.0
    %423 = vmatpush1.msra.mxu0 %v210
    %424 = vmatprep.subr.mxu0 0.0
    %425 = vmatpush1.msra.mxu0 %v211
    %426 = vmatprep.subr.mxu0 0.0
    %427 = vmatpush1.msra.mxu0 %v212
    %428 = vmatprep.subr.mxu0 0.0
    %429 = vmatpush1.msra.mxu0 %v213
    %430 = vmatprep.subr.mxu0 0.0
    %431 = vmatpush1.msra.mxu0 %v214
    %432 = vmatprep.subr.mxu0 0.0
    %433 = vmatpush1.msra.mxu0 %v215
    %434 = vmatprep.subr.mxu0 0.0
    %435 = vmatpush1.msra.mxu0 %v216
    %436 = vmatprep.subr.mxu0 0.0
    %437 = vmatpush1.msra.mxu0 %v217
    %438 = vmatprep.subr.mxu0 0.0
    %439 = vmatpush1.msra.mxu0 %v218
    %440 = vmatprep.subr.mxu0 0.0
    %441 = vmatpush1.msra.mxu0 %v219
    %442 = vmatprep.subr.mxu0 0.0
    %443 = vmatpush1.msra.mxu0 %v220
    %444 = vmatprep.subr.mxu0 0.0
    %445 = vmatpush1.msra.mxu0 %v221
    %446 = vmatprep.subr.mxu0 0.0
    %447 = vmatpush1.msra.mxu0 %v222
    %448 = vmatprep.subr.mxu0 0.0
    %449 = vmatpush1.msra.mxu0 %v223
    %450 = vmatprep.subr.mxu0 0.0
    %451 = vmatpush1.msra.mxu0 %v224
    %452 = vmatprep.subr.mxu0 0.0
    %453 = vmatpush1.msra.mxu0 %v225
    %454 = vmatprep.subr.mxu0 0.0
    %455 = vmatpush1.msra.mxu0 %v226
    %456 = vmatprep.subr.mxu0 0.0
    %457 = vmatpush1.msra.mxu0 %v227
    %458 = vmatprep.subr.mxu0 0.0
    %459 = vmatpush1.msra.mxu0 %v228
    %460 = vmatprep.subr.mxu0 0.0
    %461 = vmatpush1.msra.mxu0 %v229
    %462 = vmatprep.subr.mxu0 0.0
    %463 = vmatpush1.msra.mxu0 %v230
    %464 = vmatprep.subr.mxu0 0.0
    %465 = vmatpush1.msra.mxu0 %v231
    %466 = vmatprep.subr.mxu0 0.0
    %467 = vmatpush1.msra.mxu0 %v232
    %468 = vmatprep.subr.mxu0 0.0
    %469 = vmatpush1.msra.mxu0 %v233
    %470 = vmatprep.subr.mxu0 0.0
    %471 = vmatpush1.msra.mxu0 %v234
    %472 = vmatprep.subr.mxu0 0.0
    %473 = vmatpush1.msra.mxu0 %v235
    %474 = vmatprep.subr.mxu0 0.0
    %475 = vmatpush1.msra.mxu0 %v236
    %476 = vmatprep.subr.mxu0 0.0
    %477 = vmatpush1.msra.mxu0 %v237
    %478 = vmatprep.mubr.f32.mxu0 %v267
    %479 = vmatmul.mubr.f32.gmra.mrb[0].mxu0 %v266
    %v480 = vpop.f32.mrb[0].mxu0
    %v481 = vadd.f32 %v411, %v480
    %v482 = vpop.f32.mrb[0].mxu0
    %483 = vdwg.mxu0
    %492 = vset.pattern.permute.xlu0 0
    %493 = vperm.xlu0 %492, %v130
    %v494 = vpop.permute.xlu0 %493
    %495 = vset.pattern.permute.xlu0 0
    %496 = vperm.xlu0 %495, %v131
    %v497 = vpop.permute.xlu0 %496
    %498 = vset.pattern.permute.xlu0 0
    %499 = vperm.xlu0 %498, %v132
    %v500 = vpop.permute.xlu0 %499
    %501 = vset.pattern.permute.xlu0 0
    %502 = vperm.xlu0 %501, %v133
    %v503 = vpop.permute.xlu0 %502
    %504 = vset.pattern.permute.xlu0 0
    %505 = vperm.xlu0 %504, %v134
    %v506 = vpop.permute.xlu0 %505
    %507 = vset.pattern.permute.xlu0 0
    %508 = vperm.xlu0 %507, %v135
    %v509 = vpop.permute.xlu0 %508
    %510 = vset.pattern.permute.xlu0 0
    %511 = vperm.xlu0 %510, %v136
    %v512 = vpop.permute.xlu0 %511
    %513 = vset.pattern.permute.xlu0 0
    %514 = vperm.xlu0 %513, %v137
    %v515 = vpop.permute.xlu0 %514
    %v516 = vlaneseq
    %v517 = vand.u32 %v516, 127
    %v518 = vlaneseq
    %v519 = vshrl.u32 %v518, 7
    %v520 = vsub.s32 %v517, %v519
    %v521 = vrot.slane %v494, %v520
    %v522 = vadd.s32 %v517, 4294967288
    %v523 = vlaneseq
    %v524 = vshrl.u32 %v523, 7
    %v525 = vsub.s32 %v522, %v524
    %v526 = vrot.slane %v497, %v525
    %vm527 = vcmask 130112
    %v528 = vsel %vm527, %v526, %v521
    %v529 = vadd.s32 %v517, 4294967280
    %v530 = vlaneseq
    %v531 = vshrl.u32 %v530, 7
    %v532 = vsub.s32 %v529, %v531
    %v533 = vrot.slane %v500, %v532
    %vm534 = vcmask 195712
    %v535 = vsel %vm534, %v533, %v528
    %v536 = vadd.s32 %v517, 4294967272
    %v537 = vlaneseq
    %v538 = vshrl.u32 %v537, 7
    %v539 = vsub.s32 %v536, %v538
    %v540 = vrot.slane %v503, %v539
    %vm541 = vcmask 261312
    %v542 = vsel %vm541, %v540, %v535
    %v543 = vlaneseq
    %v544 = vshrl.u32 %v543, 7
    %v545 = vsub.s32 %v517, %v544
    %v546 = vrot.slane %v506, %v545
    %v547 = vlaneseq
    %v548 = vshrl.u32 %v547, 7
    %v549 = vsub.s32 %v522, %v548
    %v550 = vrot.slane %v509, %v549
    %v551 = vsel %vm527, %v550, %v546
    %v552 = vlaneseq
    %v553 = vshrl.u32 %v552, 7
    %v554 = vsub.s32 %v529, %v553
    %v555 = vrot.slane %v512, %v554
    %v556 = vsel %vm534, %v555, %v551
    %v557 = vlaneseq
    %v558 = vshrl.u32 %v557, 7
    %v559 = vsub.s32 %v536, %v558
    %v560 = vrot.slane %v515, %v559
    %v561 = vsel %vm541, %v560, %v556
    %vm562 = vcmask 1041409
    %v563 = vsel %vm562, %v561, %v542
    %vm564 = vcmask 261120
    %v565 = vsel %vm564, %v563, 0
    %567 = vmatprep.subr.mxu0 0.0
    %568 = vmatpush1.msra.mxu0 %v138
    %569 = vmatprep.subr.mxu0 0.0
    %570 = vmatpush1.msra.mxu0 %v139
    %571 = vmatprep.subr.mxu0 0.0
    %572 = vmatpush1.msra.mxu0 %v140
    %573 = vmatprep.subr.mxu0 0.0
    %574 = vmatpush1.msra.mxu0 %v141
    %575 = vmatprep.subr.mxu0 0.0
    %576 = vmatpush1.msra.mxu0 0.0
    %577 = vmatprep.subr.mxu0 0.0
    %578 = vmatpush1.msra.mxu0 0.0
    %579 = vmatprep.subr.mxu0 0.0
    %580 = vmatpush1.msra.mxu0 0.0
    %581 = vmatprep.subr.mxu0 0.0
    %582 = vmatpush1.msra.mxu0 0.0
    %583 = vmatprep.subr.mxu0 0.0
    %584 = vmatpush1.msra.mxu0 0.0
    %585 = vmatprep.subr.mxu0 0.0
    %586 = vmatpush1.msra.mxu0 0.0
    %587 = vmatprep.subr.mxu0 0.0
    %588 = vmatpush1.msra.mxu0 0.0
    %589 = vmatprep.subr.mxu0 0.0
    %590 = vmatpush1.msra.mxu0 0.0
    %591 = vmatprep.subr.mxu0 0.0
    %592 = vmatpush1.msra.mxu0 0.0
    %593 = vmatprep.subr.mxu0 0.0
    %594 = vmatpush1.msra.mxu0 0.0
    %595 = vmatprep.subr.mxu0 0.0
    %596 = vmatpush1.msra.mxu0 0.0
    %597 = vmatprep.subr.mxu0 0.0
    %598 = vmatpush1.msra.mxu0 0.0
    %599 = vmatprep.subr.mxu0 0.0
    %600 = vmatpush1.msra.mxu0 0.0
    %601 = vmatprep.subr.mxu0 0.0
    %602 = vmatpush1.msra.mxu0 0.0
    %603 = vmatprep.subr.mxu0 0.0
    %604 = vmatpush1.msra.mxu0 0.0
    %605 = vmatprep.subr.mxu0 0.0
    %606 = vmatpush1.msra.mxu0 0.0
    %607 = vmatprep.subr.mxu0 0.0
    %608 = vmatpush1.msra.mxu0 0.0
    %609 = vmatprep.subr.mxu0 0.0
    %610 = vmatpush1.msra.mxu0 0.0
    %611 = vmatprep.subr.mxu0 0.0
    %612 = vmatpush1.msra.mxu0 0.0
    %613 = vmatprep.subr.mxu0 0.0
    %614 = vmatpush1.msra.mxu0 0.0
    %615 = vmatprep.subr.mxu0 0.0
    %616 = vmatpush1.msra.mxu0 0.0
    %617 = vmatprep.subr.mxu0 0.0
    %618 = vmatpush1.msra.mxu0 0.0
    %619 = vmatprep.subr.mxu0 0.0
    %620 = vmatpush1.msra.mxu0 0.0
    %621 = vmatprep.subr.mxu0 0.0
    %622 = vmatpush1.msra.mxu0 0.0
    %623 = vmatprep.subr.mxu0 0.0
    %624 = vmatpush1.msra.mxu0 0.0
    %625 = vmatprep.subr.mxu0 0.0
    %626 = vmatpush1.msra.mxu0 0.0
    %627 = vmatprep.subr.mxu0 0.0
    %628 = vmatpush1.msra.mxu0 0.0
    %629 = vmatprep.subr.mxu0 0.0
    %630 = vmatpush1.msra.mxu0 0.0
    %631 = vmatprep.mubr.f32.mxu0 0.0
    %632 = vmatmul.mubr.f32.gmra.mrb[0].mxu0 %v565
    %v633 = vpop.f32.mrb[0].mxu0
    %v634 = vadd.f32 %v481, %v633
    %v635 = vpop.f32.mrb[0].mxu0
    %636 = vdwg.mxu0
    %v637 = vlaneseq
    %v638 = vshrl.u32 %v637, 7
    %v639 = vsub.s32 0, %v638
    %v640 = vrot.slane %v238, %v639
    %v641 = vadd.f32 %v634, %v640
    %vm642 = vcmask 25600
    %643 = vst.msk [vmem:[#allocation2] sm:$0x3] %vm642, %v641
    // Predicated region
    $region18: #{tpu_custom_call.1} parent=1 // pred_check
      _
    $region19: #{tpu_custom_call.1} parent=1 // pred_check_branch
      %645 = sbr.rel (0) target = $region21
    $region20: #{tpu_custom_call.1} parent=1 // pred_region
      %s647 = ssub.s32 32, 32
      %648 = vsyncadd [#allocation3], %s647
      %s650 = sshll.u32 [#allocation2], 4
      %s651 = int_to_ptr.vmem [resolvable:$true] %s650
      %653 = dma.vmem_to_hbm [thread:$0]  %s651, 32, %s4, [#allocation3]
    $region21: #{tpu_custom_call.1} parent=1 // pred_fallthru
      _
    // Predicated region
    $region22: #{tpu_custom_call.1} parent=1 // pred_check
      _
    $region23: #{tpu_custom_call.1} parent=1 // pred_check_branch
      %655 = sbr.rel (0) target = $region25
    $region24: #{tpu_custom_call.1} parent=1 // pred_region
      %656 = dma.done [#allocation3], 32
    $region25: #{tpu_custom_call.1} parent=1 // pred_fallthru
      _
    %657 = vsyncpa [#allocation3], 1

</llo_original>
